<compile_context>
chip_gen: v5e
topology: v5e:2x2
jax: 0.10.0
libtpu: 0.0.40
codegen_flags: <defaults>
</compile_context>

<pallas_src>
import functools

import jax
import jax.numpy as jnp
from jax.experimental import pallas as pl
from jax.experimental.pallas import tpu as pltpu


def _mlp_kernel(x_ref, w1_ref, b1_ref, w2_ref, b2_ref, w3_ref, b3_ref, o_ref,
                *, compute_dtype):
    # x arrives in its HBM dtype (typically f32); cast to the MXU compute
    # dtype in VMEM so there is no extra standalone convert pass over HBM.
    x = x_ref[...].astype(compute_dtype)                  # (TM, 128)

    # fc1: (TM,128) @ (128,64) -> f32 acc; bias + ReLU in f32 on the VPU.
    h1 = jnp.dot(x, w1_ref[...], preferred_element_type=jnp.float32)
    h1 = jnp.maximum(h1 + b1_ref[...], 0.0)

    # Dropout(p=0.5): identity (eval-mode semantics).
    # TODO(synk): training-mode dropout mask not emitted.

    # fc2: (TM,64) @ (64,16) -> f32 acc; bias + ReLU in f32.
    h2 = jnp.dot(h1.astype(compute_dtype), w2_ref[...],
                 preferred_element_type=jnp.float32)
    h2 = jnp.maximum(h2 + b2_ref[...], 0.0)

    # fc3: (TM,16) @ (16,10) -> f32 logits.
    o = jnp.dot(h2.astype(compute_dtype), w3_ref[...],
                preferred_element_type=jnp.float32)
    o_ref[...] = (o + b3_ref[...]).astype(o_ref.dtype)


def classifier_forward(x, params, *, compute_dtype=jnp.bfloat16,
                       block_m=4096, out_dtype=jnp.float32,
                       core_parallel=False, vmem_limit_bytes=48 << 20):
    """x: (B, 128). Returns logits (B, 10) in `out_dtype`.

    Weights are stored transposed relative to torch, i.e. (in_features,
    out_features), so the kernel does plain x @ W + b on the MXU.  Pre-cast
    the weights once with `prepare_params` to avoid per-call converts.
    """
    w1, b1, w2, b2, w3, b3 = params
    B, feat = x.shape
    assert feat == 128

    # Batch tile: full extent for small batches; otherwise a multiple of 8
    # sublanes (the (8,128) BlockSpec rule applies to tiled dims only).
    if B <= block_m:
        tm = B
    else:
        tm = (block_m // 8) * 8
        assert tm >= 8, "block_m must be >= 8 when B > block_m"
    grid = (pl.cdiv(B, tm),)

    # Cast weights only if the caller did not pre-cast (no-op after
    # prepare_params -> no per-call HBM convert ops on the hot path).
    w1c = w1 if w1.dtype == compute_dtype else w1.astype(compute_dtype)
    w2c = w2 if w2.dtype == compute_dtype else w2.astype(compute_dtype)
    w3c = w3 if w3.dtype == compute_dtype else w3.astype(compute_dtype)

    const = lambda i: (0, 0)  # weights/biases: resident, DMA'd once
    in_specs = [
        pl.BlockSpec((tm, 128), lambda i: (i, 0)),   # x tile, streamed per step
        pl.BlockSpec((128, 64), const),
        pl.BlockSpec((1, 64), const),
        pl.BlockSpec((64, 16), const),
        pl.BlockSpec((1, 16), const),
        pl.BlockSpec((16, 10), const),
        pl.BlockSpec((1, 10), const),
    ]
    out_specs = pl.BlockSpec((tm, 10), lambda i: (i, 0))

    # Advisory cost estimate for XLA's scheduler.
    out_itemsize = jax.dtypes.canonicalize_dtype(out_dtype).itemsize
    w_bytes = sum(int(a.size) * a.dtype.itemsize
                  for a in (w1c, b1, w2c, b2, w3c, b3))
    cost = pl.CostEstimate(
        flops=2 * B * (128 * 64 + 64 * 16 + 16 * 10),
        transcendentals=0,
        bytes_accessed=B * (128 * x.dtype.itemsize + 10 * out_itemsize) + w_bytes,
    )

    # v7x: pass core_parallel=True for true 2-TensorCore sharding of the batch
    # grid; "parallel" is the safe default on single-TC v5e/v6e.
    dim_sem = (pltpu.CORE_PARALLEL,) if core_parallel else ("parallel",)

    kernel = functools.partial(_mlp_kernel, compute_dtype=compute_dtype)
    return pl.pallas_call(
        kernel,
        out_shape=jax.ShapeDtypeStruct((B, 10), out_dtype),
        grid=grid,
        in_specs=in_specs,
        out_specs=out_specs,
        compiler_params=pltpu.CompilerParams(
            dimension_semantics=dim_sem,
            vmem_limit_bytes=vmem_limit_bytes,
        ),
        cost_estimate=cost,
    )(x, w1c, b1, w2c, b2, w3c, b3)


def init_params(key):
    """torch.nn.Linear-style init: U(-1/sqrt(fan_in), 1/sqrt(fan_in)) for
    weights and biases.  Weights stored as (in_features, out_features), f32."""
    dims = [(128, 64), (64, 16), (16, 10)]
    params = []
    keys = jax.random.split(key, 2 * len(dims))
    for i, (fan_in, fan_out) in enumerate(dims):
        bound = 1.0 / (fan_in ** 0.5)
        w = jax.random.uniform(keys[2 * i], (fan_in, fan_out),
                               minval=-bound, maxval=bound, dtype=jnp.float32)
        b = jax.random.uniform(keys[2 * i + 1], (1, fan_out),
                               minval=-bound, maxval=bound, dtype=jnp.float32)
        params += [w, b]
    return tuple(params)


def prepare_params(params, compute_dtype=jnp.bfloat16):
    """One-time cast of the matmul weights to the MXU compute dtype.
    Biases stay f32 (bias-add / ReLU run in f32 on the VPU)."""
    w1, b1, w2, b2, w3, b3 = params
    return (w1.astype(compute_dtype), b1.astype(jnp.float32),
            w2.astype(compute_dtype), b2.astype(jnp.float32),
            w3.astype(compute_dtype), b3.astype(jnp.float32))


if __name__ == "__main__":
    key = jax.random.PRNGKey(0)
    k_param, k_x = jax.random.split(key)

    params_f32 = init_params(k_param)
    params = prepare_params(params_f32)      # one-time weight cast (bf16)

    # Small deterministic test: B=24 rows of 128 features.
    B = 24
    x = jax.random.normal(k_x, (B, 128), dtype=jnp.float32)

    # block_m=8 exercises a 3-step batch grid at this tiny size
    # (production default is block_m=4096).
    logits = classifier_forward(x, params, block_m=8)
    logits = jax.block_until_ready(logits)
    assert logits.shape == (B, 10)

    # Also exercise the single full-extent-block path (default block_m).
    logits_full = jax.block_until_ready(classifier_forward(x, params))
    assert jnp.allclose(logits, logits_full, atol=1e-5, rtol=1e-5)

    w1, b1, w2, b2, w3, b3 = params          # bf16 weights, f32 biases
    w1f, _, w2f, _, w3f, _ = params_f32      # original f32 weights

    # Tight reference: same bf16 matmul operands / f32 accumulation.
    cdt = jnp.bfloat16
    h1 = jnp.maximum(
        jnp.dot(x.astype(cdt), w1, preferred_element_type=jnp.float32) + b1, 0.0)
    h2 = jnp.maximum(
        jnp.dot(h1.astype(cdt), w2, preferred_element_type=jnp.float32) + b2, 0.0)
    ref_bf16 = jnp.dot(h2.astype(cdt), w3, preferred_element_type=jnp.float32) + b3
    assert jnp.allclose(logits, ref_bf16, atol=1e-4, rtol=1e-4), (
        jnp.max(jnp.abs(logits - ref_bf16)))

    # Loose reference: full-f32 math of the original module (bf16 rounding slack).
    r = jnp.maximum(x @ w1f + b1, 0.0)
    r = jnp.maximum(r @ w2f + b2, 0.0)
    ref_f32 = r @ w3f + b3
    assert jnp.allclose(logits, ref_f32, atol=5e-2, rtol=5e-2), (
        jnp.max(jnp.abs(logits - ref_f32)))

    print("KERNEL_OK")
</pallas_src>

<mosaic_0001>
module attributes {stable_mosaic.version = 11 : i64} {
  func.func @_mlp_kernel(%arg0: i32, %arg1: memref<8x128xf32, #tpu.memory_space<vmem>>, %arg2: memref<128x64xbf16, #tpu.memory_space<vmem>>, %arg3: memref<1x64xf32, #tpu.memory_space<vmem>>, %arg4: memref<64x16xbf16, #tpu.memory_space<vmem>>, %arg5: memref<1x16xf32, #tpu.memory_space<vmem>>, %arg6: memref<16x10xbf16, #tpu.memory_space<vmem>>, %arg7: memref<1x10xf32, #tpu.memory_space<vmem>>, %arg8: memref<8x10xf32, #tpu.memory_space<vmem>>) attributes {dimension_semantics = [#tpu.dimension_semantics<parallel>], iteration_bounds = array<i64: 3>, scalar_prefetch = 0 : i64, scratch_operands = 0 : i64, tpu.core_type = #tpu.core_type<tc>, window_params = [{transform_indices = @transform_0, window_bounds = array<i64: 8, 128>}, {pipeline_mode = #tpu.pipeline_mode<synchronous>, transform_indices = @transform_1, window_bounds = array<i64: 128, 64>}, {pipeline_mode = #tpu.pipeline_mode<synchronous>, transform_indices = @transform_2, window_bounds = array<i64: 1, 64>}, {pipeline_mode = #tpu.pipeline_mode<synchronous>, transform_indices = @transform_3, window_bounds = array<i64: 64, 16>}, {pipeline_mode = #tpu.pipeline_mode<synchronous>, transform_indices = @transform_4, window_bounds = array<i64: 1, 16>}, {pipeline_mode = #tpu.pipeline_mode<synchronous>, transform_indices = @transform_5, window_bounds = array<i64: 16, 10>}, {pipeline_mode = #tpu.pipeline_mode<synchronous>, transform_indices = @transform_6, window_bounds = array<i64: 1, 10>}, {transform_indices = @transform_7, window_bounds = array<i64: 8, 10>}]} {
    %c0 = arith.constant 0 : index
    %c0_0 = arith.constant 0 : index
    %0 = vector.load %arg1[%c0, %c0_0] : memref<8x128xf32, #tpu.memory_space<vmem>>, vector<8x128xf32>
    %1 = arith.truncf %0 : vector<8x128xf32> to vector<8x128xbf16>
    %c0_1 = arith.constant 0 : index
    %c0_2 = arith.constant 0 : index
    %2 = vector.load %arg2[%c0_1, %c0_2] : memref<128x64xbf16, #tpu.memory_space<vmem>>, vector<128x64xbf16>
    %cst = arith.constant dense<0.000000e+00> : vector<8x64xf32>
    %3 = tpu.matmul %1, %2, %cst {dimension_numbers = #tpu.dot_dimension_numbers<[1], [0], [0], [1], [0, 0, 1, 1], [], []>} : vector<8x128xbf16>, vector<128x64xbf16>, vector<8x64xf32> -> vector<8x64xf32>
    %c0_3 = arith.constant 0 : index
    %c0_4 = arith.constant 0 : index
    %4 = vector.load %arg3[%c0_3, %c0_4] : memref<1x64xf32, #tpu.memory_space<vmem>>, vector<1x64xf32>
    %5 = vector.broadcast %4 : vector<1x64xf32> to vector<8x64xf32>
    %6 = arith.addf %3, %5 : vector<8x64xf32>
    %cst_5 = arith.constant 0.000000e+00 : f32
    %7 = vector.broadcast %cst_5 : f32 to vector<8x64xf32>
    %8 = arith.maximumf %6, %7 : vector<8x64xf32>
    %9 = arith.truncf %8 : vector<8x64xf32> to vector<8x64xbf16>
    %c0_6 = arith.constant 0 : index
    %c0_7 = arith.constant 0 : index
    %10 = vector.load %arg4[%c0_6, %c0_7] : memref<64x16xbf16, #tpu.memory_space<vmem>>, vector<64x16xbf16>
    %cst_8 = arith.constant dense<0.000000e+00> : vector<8x16xf32>
    %11 = tpu.matmul %9, %10, %cst_8 {dimension_numbers = #tpu.dot_dimension_numbers<[1], [0], [0], [1], [0, 0, 1, 1], [], []>} : vector<8x64xbf16>, vector<64x16xbf16>, vector<8x16xf32> -> vector<8x16xf32>
    %c0_9 = arith.constant 0 : index
    %c0_10 = arith.constant 0 : index
    %12 = vector.load %arg5[%c0_9, %c0_10] : memref<1x16xf32, #tpu.memory_space<vmem>>, vector<1x16xf32>
    %13 = vector.broadcast %12 : vector<1x16xf32> to vector<8x16xf32>
    %14 = arith.addf %11, %13 : vector<8x16xf32>
    %cst_11 = arith.constant 0.000000e+00 : f32
    %15 = vector.broadcast %cst_11 : f32 to vector<8x16xf32>
    %16 = arith.maximumf %14, %15 : vector<8x16xf32>
    %17 = arith.truncf %16 : vector<8x16xf32> to vector<8x16xbf16>
    %c0_12 = arith.constant 0 : index
    %c0_13 = arith.constant 0 : index
    %18 = vector.load %arg6[%c0_12, %c0_13] : memref<16x10xbf16, #tpu.memory_space<vmem>>, vector<16x10xbf16>
    %cst_14 = arith.constant dense<0.000000e+00> : vector<8x10xf32>
    %19 = tpu.matmul %17, %18, %cst_14 {dimension_numbers = #tpu.dot_dimension_numbers<[1], [0], [0], [1], [0, 0, 1, 1], [], []>} : vector<8x16xbf16>, vector<16x10xbf16>, vector<8x10xf32> -> vector<8x10xf32>
    %c0_15 = arith.constant 0 : index
    %c0_16 = arith.constant 0 : index
    %20 = vector.load %arg7[%c0_15, %c0_16] : memref<1x10xf32, #tpu.memory_space<vmem>>, vector<1x10xf32>
    %21 = vector.broadcast %20 : vector<1x10xf32> to vector<8x10xf32>
    %22 = arith.addf %19, %21 : vector<8x10xf32>
    %c0_17 = arith.constant 0 : index
    %c0_18 = arith.constant 0 : index
    %23 = vector.load %arg8[%c0_17, %c0_18] : memref<8x10xf32, #tpu.memory_space<vmem>>, vector<8x10xf32>
    tpu.vector_store %arg8[%c0_17, %c0_18], %22 {strides = array<i32>} : memref<8x10xf32, #tpu.memory_space<vmem>>, vector<8x10xf32>,
    return
  }
  func.func @transform_0(%arg0: i32) -> (i32, i32) {
    %c0_i32 = arith.constant 0 : i32
    %c0_i32_0 = arith.constant 0 : i32
    return %arg0, %c0_i32 : i32, i32
  }
  func.func @transform_1(%arg0: i32) -> (i32, i32) {
    %c0_i32 = arith.constant 0 : i32
    %c0_i32_0 = arith.constant 0 : i32
    %c0_i32_1 = arith.constant 0 : i32
    return %c0_i32, %c0_i32_0 : i32, i32
  }
  func.func @transform_2(%arg0: i32) -> (i32, i32) {
    %c0_i32 = arith.constant 0 : i32
    %c0_i32_0 = arith.constant 0 : i32
    %c0_i32_1 = arith.constant 0 : i32
    return %c0_i32, %c0_i32_0 : i32, i32
  }
  func.func @transform_3(%arg0: i32) -> (i32, i32) {
    %c0_i32 = arith.constant 0 : i32
    %c0_i32_0 = arith.constant 0 : i32
    %c0_i32_1 = arith.constant 0 : i32
    return %c0_i32, %c0_i32_0 : i32, i32
  }
  func.func @transform_4(%arg0: i32) -> (i32, i32) {
    %c0_i32 = arith.constant 0 : i32
    %c0_i32_0 = arith.constant 0 : i32
    %c0_i32_1 = arith.constant 0 : i32
    return %c0_i32, %c0_i32_0 : i32, i32
  }
  func.func @transform_5(%arg0: i32) -> (i32, i32) {
    %c0_i32 = arith.constant 0 : i32
    %c0_i32_0 = arith.constant 0 : i32
    %c0_i32_1 = arith.constant 0 : i32
    return %c0_i32, %c0_i32_0 : i32, i32
  }
  func.func @transform_6(%arg0: i32) -> (i32, i32) {
    %c0_i32 = arith.constant 0 : i32
    %c0_i32_0 = arith.constant 0 : i32
    %c0_i32_1 = arith.constant 0 : i32
    return %c0_i32, %c0_i32_0 : i32, i32
  }
  func.func @transform_7(%arg0: i32) -> (i32, i32) {
    %c0_i32 = arith.constant 0 : i32
    %c0_i32_0 = arith.constant 0 : i32
    return %arg0, %c0_i32 : i32, i32
  }
}

</mosaic_0001>

<llo_original>
// kernel: tpu_custom_call.1
$region0: #{tpu_custom_call.1}
  #allocation0 [shape = 'u32[]', space=smem, size = 0x4, offset = 0x4, fixed_abs, tag = 'smem constant byte address 0x4 - core index']
  #allocation1 [shape = 'u32[72,128]{1,0:T(1,128)}', space=vmem, size = 0x9000, scoped, tag = 'internal scratch']
  %s0 = inlined_call_operand.vmem [shape: f32[24,128], index: 0, kind: input, shape index: {}]
  %s1 = inlined_call_operand.vmem [shape: bf16[128,64], index: 1, kind: input, shape index: {}]
  %s2 = inlined_call_operand.vmem [shape: f32[1,64], index: 2, kind: input, shape index: {}]
  %s3 = inlined_call_operand.vmem [shape: bf16[64,16], index: 3, kind: input, shape index: {}]
  %s4 = inlined_call_operand.vmem [shape: f32[1,16], index: 4, kind: input, shape index: {}]
  %s5 = inlined_call_operand.vmem [shape: bf16[16,10], index: 5, kind: input, shape index: {}]
  %s6 = inlined_call_operand.vmem [shape: f32[1,10], index: 6, kind: input, shape index: {}]
  %s7 = inlined_call_operand.vmem [shape: f32[24,10], index: 7, kind: output, shape index: {}]
  %s8 = sld [smem:[#allocation0]]
  $region61: #{tpu_custom_call.1} parent=0
    _
  %s10 = ssub.s32 1, %s8
  %s11 = scalar_select 0, %s10, %s8
  loop: start=0, step=1, limit=5
  $region2: #{tpu_custom_call.1} parent=0 // loop_pre_header
    _
  $region3: #{tpu_custom_call.1} parent=0 // loop_header
    %s13 = sphi 0, %s17
    %p14 = scmp.ge.s32.totalorder %s13, 5
    %s23 = sphi 0, %s25
    %s26 = sphi 0, %s23
    %s27 = sphi 0, %s26
    %s43 = sphi 0, %s27
    %s47 = sphi 0, %s47
    %s49 = sphi 0, %s47
    %s50 = sphi 0, %s49
    %s64 = sphi 0, %s50
    %s68 = sphi 0, %s68
    %s70 = sphi 0, %s68
    %s71 = sphi 0, %s70
    %s85 = sphi 0, %s71
    %s89 = sphi 0, %s89
    %s91 = sphi 0, %s89
    %s92 = sphi 0, %s91
    %s106 = sphi 0, %s92
    %s110 = sphi 0, %s110
    %s112 = sphi 0, %s110
    %s113 = sphi 0, %s112
    %s127 = sphi 0, %s113
    %s131 = sphi 0, %s131
    %s133 = sphi 0, %s131
    %s134 = sphi 0, %s133
    %s148 = sphi 0, %s134
    %s152 = sphi 0, %s152
    %s154 = sphi 0, %s152
    %s155 = sphi 0, %s154
    %s169 = sphi 0, %s155
    %s175 = sphi 0, %s177
    %s178 = sphi 0, %s175
    %s179 = sphi 0, %s178
    %s195 = sphi 0, %s179
  $region4: #{tpu_custom_call.1} parent=0 // loop_header_branch
    %16 = sbr.rel (%p14) target = $region8
  $region5: #{tpu_custom_call.1} parent=0 // loop_body
    %s18 = ssub.s32 %s13, 1
    %s19 = ssub.s32 %s13, 2
    %s20 = sadd.s32 %s13, 1
    %s21 = ssub.s32 %s13, %s20
    %p22 = scmp.eq.s32.totalorder %s21, 0
    %s24 = sadd.s32 %s23, 1
    %s25 = scalar_select %p22, %s23, %s24
    %p28 = pneg %p22
    %p29 = scmp.eq.s32.totalorder %s13, 2
    %p30 = por %p28, %p29
    %p31 = scmp.ne.s32.totalorder %s23, %s26
    %p32 = scmp.eq.s32.totalorder %s13, 0
    %p33 = por %p31, %p32
    %p34 = scmp.ne.s32.totalorder %s23, %s26
    %p35 = scmp.eq.s32.totalorder %s18, 2
    %p36 = por %p34, %p35
    %p37 = scmp.ne.s32.totalorder %s26, %s27
    %p38 = scmp.eq.s32.totalorder %s18, 0
    %p39 = por %p37, %p38
    %p40 = scmp.ne.s32.totalorder %s26, %s27
    %p41 = scmp.eq.s32.totalorder %s19, 2
    %p42 = por %p40, %p41
    %p44 = scmp.ne.s32.totalorder %s27, %s43
    %p45 = scmp.eq.s32.totalorder %s19, 0
    %p46 = por %p44, %p45
    %s48 = sadd.s32 %s47, 1
    %p51 = scmp.eq.s32.totalorder %s13, 2
    %p52 = scmp.ne.s32.totalorder %s47, %s49
    %p53 = scmp.eq.s32.totalorder %s13, 0
    %p54 = por %p52, %p53
    %p55 = scmp.ne.s32.totalorder %s47, %s49
    %p56 = scmp.eq.s32.totalorder %s18, 2
    %p57 = por %p55, %p56
    %p58 = scmp.ne.s32.totalorder %s49, %s50
    %p59 = scmp.eq.s32.totalorder %s18, 0
    %p60 = por %p58, %p59
    %p61 = scmp.ne.s32.totalorder %s49, %s50
    %p62 = scmp.eq.s32.totalorder %s19, 2
    %p63 = por %p61, %p62
    %p65 = scmp.ne.s32.totalorder %s50, %s64
    %p66 = scmp.eq.s32.totalorder %s19, 0
    %p67 = por %p65, %p66
    %s69 = sadd.s32 %s68, 1
    %p72 = scmp.eq.s32.totalorder %s13, 2
    %p73 = scmp.ne.s32.totalorder %s68, %s70
    %p74 = scmp.eq.s32.totalorder %s13, 0
    %p75 = por %p73, %p74
    %p76 = scmp.ne.s32.totalorder %s68, %s70
    %p77 = scmp.eq.s32.totalorder %s18, 2
    %p78 = por %p76, %p77
    %p79 = scmp.ne.s32.totalorder %s70, %s71
    %p80 = scmp.eq.s32.totalorder %s18, 0
    %p81 = por %p79, %p80
    %p82 = scmp.ne.s32.totalorder %s70, %s71
    %p83 = scmp.eq.s32.totalorder %s19, 2
    %p84 = por %p82, %p83
    %p86 = scmp.ne.s32.totalorder %s71, %s85
    %p87 = scmp.eq.s32.totalorder %s19, 0
    %p88 = por %p86, %p87
    %s90 = sadd.s32 %s89, 1
    %p93 = scmp.eq.s32.totalorder %s13, 2
    %p94 = scmp.ne.s32.totalorder %s89, %s91
    %p95 = scmp.eq.s32.totalorder %s13, 0
    %p96 = por %p94, %p95
    %p97 = scmp.ne.s32.totalorder %s89, %s91
    %p98 = scmp.eq.s32.totalorder %s18, 2
    %p99 = por %p97, %p98
    %p100 = scmp.ne.s32.totalorder %s91, %s92
    %p101 = scmp.eq.s32.totalorder %s18, 0
    %p102 = por %p100, %p101
    %p103 = scmp.ne.s32.totalorder %s91, %s92
    %p104 = scmp.eq.s32.totalorder %s19, 2
    %p105 = por %p103, %p104
    %p107 = scmp.ne.s32.totalorder %s92, %s106
    %p108 = scmp.eq.s32.totalorder %s19, 0
    %p109 = por %p107, %p108
    %s111 = sadd.s32 %s110, 1
    %p114 = scmp.eq.s32.totalorder %s13, 2
    %p115 = scmp.ne.s32.totalorder %s110, %s112
    %p116 = scmp.eq.s32.totalorder %s13, 0
    %p117 = por %p115, %p116
    %p118 = scmp.ne.s32.totalorder %s110, %s112
    %p119 = scmp.eq.s32.totalorder %s18, 2
    %p120 = por %p118, %p119
    %p121 = scmp.ne.s32.totalorder %s112, %s113
    %p122 = scmp.eq.s32.totalorder %s18, 0
    %p123 = por %p121, %p122
    %p124 = scmp.ne.s32.totalorder %s112, %s113
    %p125 = scmp.eq.s32.totalorder %s19, 2
    %p126 = por %p124, %p125
    %p128 = scmp.ne.s32.totalorder %s113, %s127
    %p129 = scmp.eq.s32.totalorder %s19, 0
    %p130 = por %p128, %p129
    %s132 = sadd.s32 %s131, 1
    %p135 = scmp.eq.s32.totalorder %s13, 2
    %p136 = scmp.ne.s32.totalorder %s131, %s133
    %p137 = scmp.eq.s32.totalorder %s13, 0
    %p138 = por %p136, %p137
    %p139 = scmp.ne.s32.totalorder %s131, %s133
    %p140 = scmp.eq.s32.totalorder %s18, 2
    %p141 = por %p139, %p140
    %p142 = scmp.ne.s32.totalorder %s133, %s134
    %p143 = scmp.eq.s32.totalorder %s18, 0
    %p144 = por %p142, %p143
    %p145 = scmp.ne.s32.totalorder %s133, %s134
    %p146 = scmp.eq.s32.totalorder %s19, 2
    %p147 = por %p145, %p146
    %p149 = scmp.ne.s32.totalorder %s134, %s148
    %p150 = scmp.eq.s32.totalorder %s19, 0
    %p151 = por %p149, %p150
    %s153 = sadd.s32 %s152, 1
    %p156 = scmp.eq.s32.totalorder %s13, 2
    %p157 = scmp.ne.s32.totalorder %s152, %s154
    %p158 = scmp.eq.s32.totalorder %s13, 0
    %p159 = por %p157, %p158
    %p160 = scmp.ne.s32.totalorder %s152, %s154
    %p161 = scmp.eq.s32.totalorder %s18, 2
    %p162 = por %p160, %p161
    %p163 = scmp.ne.s32.totalorder %s154, %s155
    %p164 = scmp.eq.s32.totalorder %s18, 0
    %p165 = por %p163, %p164
    %p166 = scmp.ne.s32.totalorder %s154, %s155
    %p167 = scmp.eq.s32.totalorder %s19, 2
    %p168 = por %p166, %p167
    %p170 = scmp.ne.s32.totalorder %s155, %s169
    %p171 = scmp.eq.s32.totalorder %s19, 0
    %p172 = por %p170, %p171
    %s173 = ssub.s32 %s13, %s20
    %p174 = scmp.eq.s32.totalorder %s173, 0
    %s176 = sadd.s32 %s175, 1
    %s177 = scalar_select %p174, %s175, %s176
    %p180 = pneg %p174
    %p181 = scmp.eq.s32.totalorder %s13, 2
    %p182 = por %p180, %p181
    %p183 = scmp.ne.s32.totalorder %s175, %s178
    %p184 = scmp.eq.s32.totalorder %s13, 0
    %p185 = por %p183, %p184
    %p186 = scmp.ne.s32.totalorder %s175, %s178
    %p187 = scmp.eq.s32.totalorder %s18, 2
    %p188 = por %p186, %p187
    %p189 = scmp.ne.s32.totalorder %s178, %s179
    %p190 = scmp.eq.s32.totalorder %s18, 0
    %p191 = por %p189, %p190
    %p192 = scmp.ne.s32.totalorder %s178, %s179
    %p193 = scmp.eq.s32.totalorder %s19, 2
    %p194 = por %p192, %p193
    %p196 = scmp.ne.s32.totalorder %s179, %s195
    %p197 = scmp.eq.s32.totalorder %s19, 0
    %p198 = por %p196, %p197
    %p199 = scmp.le.s32.totalorder 1, %s13
    %p200 = scmp.lt.s32.totalorder %s13, 4
    %p201 = pnand %p199, %p200
    %p202 = pneg %p201
    // Predicated region
    $region9: #{tpu_custom_call.1} parent=5 // pred_check
      _
    $region10: #{tpu_custom_call.1} parent=5 // pred_check_branch
      %204 = sbr.rel (%p201) target = $region12
    $region11: #{tpu_custom_call.1} parent=5 // pred_region
      %s205 = ssub.s32 %s13, 1
      // Predicated region
      $region13: #{tpu_custom_call.1} parent=11 // pred_check
        %p206 = pneg %p60
      $region14: #{tpu_custom_call.1} parent=11 // pred_check_branch
        %208 = sbr.rel (%p206) target = $region16
      $region15: #{tpu_custom_call.1} parent=11 // pred_region
        _
      $region16: #{tpu_custom_call.1} parent=11 // pred_fallthru
        _
      // Predicated region
      $region17: #{tpu_custom_call.1} parent=11 // pred_check
        %p209 = pneg %p81
      $region18: #{tpu_custom_call.1} parent=11 // pred_check_branch
        %211 = sbr.rel (%p209) target = $region20
      $region19: #{tpu_custom_call.1} parent=11 // pred_region
        _
      $region20: #{tpu_custom_call.1} parent=11 // pred_fallthru
        _
      // Predicated region
      $region21: #{tpu_custom_call.1} parent=11 // pred_check
        %p212 = pneg %p102
      $region22: #{tpu_custom_call.1} parent=11 // pred_check_branch
        %214 = sbr.rel (%p212) target = $region24
      $region23: #{tpu_custom_call.1} parent=11 // pred_region
        _
      $region24: #{tpu_custom_call.1} parent=11 // pred_fallthru
        _
      // Predicated region
      $region25: #{tpu_custom_call.1} parent=11 // pred_check
        %p215 = pneg %p123
      $region26: #{tpu_custom_call.1} parent=11 // pred_check_branch
        %217 = sbr.rel (%p215) target = $region28
      $region27: #{tpu_custom_call.1} parent=11 // pred_region
        _
      $region28: #{tpu_custom_call.1} parent=11 // pred_fallthru
        _
      // Predicated region
      $region29: #{tpu_custom_call.1} parent=11 // pred_check
        %p218 = pneg %p144
      $region30: #{tpu_custom_call.1} parent=11 // pred_check_branch
        %220 = sbr.rel (%p218) target = $region32
      $region31: #{tpu_custom_call.1} parent=11 // pred_region
        _
      $region32: #{tpu_custom_call.1} parent=11 // pred_fallthru
        _
      // Predicated region
      $region33: #{tpu_custom_call.1} parent=11 // pred_check
        %p221 = pneg %p165
      $region34: #{tpu_custom_call.1} parent=11 // pred_check_branch
        %223 = sbr.rel (%p221) target = $region36
      $region35: #{tpu_custom_call.1} parent=11 // pred_region
        _
      $region36: #{tpu_custom_call.1} parent=11 // pred_fallthru
        _
    $region12: #{tpu_custom_call.1} parent=5 // pred_fallthru
      _
    %p224 = scmp.lt.s32.totalorder %s13, 3
    // Predicated region
    $region37: #{tpu_custom_call.1} parent=5 // pred_check
      %p225 = pneg %p224
    $region38: #{tpu_custom_call.1} parent=5 // pred_check_branch
      %227 = sbr.rel (%p225) target = $region40
    $region39: #{tpu_custom_call.1} parent=5 // pred_region
      // Predicated region
      $region41: #{tpu_custom_call.1} parent=39 // pred_check
        %p228 = pneg %p33
      $region42: #{tpu_custom_call.1} parent=39 // pred_check_branch
        %230 = sbr.rel (%p228) target = $region44
      $region43: #{tpu_custom_call.1} parent=39 // pred_region
        %p231 = scmp.lt.s32.totalorder %s13, 2
        %s232 = scalar_select %p231, %s13, 2
        %s233 = smul.addr %s232, 8
        %s234 = scalar_lea.vmem %s0, %s233
      $region44: #{tpu_custom_call.1} parent=39 // pred_fallthru
        _
    $region40: #{tpu_custom_call.1} parent=5 // pred_fallthru
      _
    %p235 = scmp.le.s32.totalorder 1, %s13
    %p236 = scmp.lt.s32.totalorder %s13, 4
    %p237 = pnand %p235, %p236
    %p238 = pneg %p237
    // Predicated region
    $region45: #{tpu_custom_call.1} parent=5 // pred_check
      _
    $region46: #{tpu_custom_call.1} parent=5 // pred_check_branch
      %240 = sbr.rel (%p237) target = $region48
    $region47: #{tpu_custom_call.1} parent=5 // pred_region
      %s241 = ssub.s32 %s13, 1
      %p242 = scmp.lt.s32.totalorder %s18, 2
      %s243 = scalar_select %p242, %s18, 2
      %s244 = smul.addr %s243, 8
      %s245 = scalar_lea.vmem %s0, %s244
      %p246 = pneg %p39
      %p247 = pneg %p36
      %p248 = pneg %p60
      %p249 = pneg %p57
      %p250 = pneg %p81
      %p251 = pneg %p78
      %p252 = pneg %p102
      %p253 = pneg %p99
      %p254 = pneg %p123
      %p255 = pneg %p120
      %p256 = pneg %p144
      %p257 = pneg %p141
      %p258 = pneg %p165
      %p259 = pneg %p162
      %p260 = pneg %p191
      %p261 = pneg %p188
      %p262 = scmp.lt.s32.totalorder %s18, 2
      %s263 = scalar_select %p262, %s18, 2
      %s264 = smul.addr %s263, 8
      %s265 = scalar_lea.vmem %s7, %s264
      %p266 = scmp.lt.s32.totalorder %s18, 2
      %s267 = scalar_select %p266, %s18, 2
      %s268 = smul.addr %s267, 8
      %s269 = scalar_lea.vmem %s0, %s268
      %p270 = scmp.lt.s32.totalorder %s18, 2
      %s271 = scalar_select %p270, %s18, 2
      %s272 = smul.addr %s271, 8
      %s273 = scalar_lea.vmem %s7, %s272
      %v275 = vld [vmem:[%s269] sm:$0xff]
      %v276 = vpack.c.bf16 %v275, %v275
      %v277 = vld [vmem:[%s1] sm:$0xf]
      %v278 = vld [vmem:[%s1 + $0x4] sm:$0xf]
      %v279 = vld [vmem:[%s1 + $0x8] sm:$0xf]
      %v280 = vld [vmem:[%s1 + $0xc] sm:$0xf]
      %v281 = vld [vmem:[%s1 + $0x10] sm:$0xf]
      %v282 = vld [vmem:[%s1 + $0x14] sm:$0xf]
      %v283 = vld [vmem:[%s1 + $0x18] sm:$0xf]
      %v284 = vld [vmem:[%s1 + $0x1c] sm:$0xf]
      %v285 = vld [vmem:[%s1 + $0x20] sm:$0xf]
      %v286 = vld [vmem:[%s1 + $0x24] sm:$0xf]
      %v287 = vld [vmem:[%s1 + $0x28] sm:$0xf]
      %v288 = vld [vmem:[%s1 + $0x2c] sm:$0xf]
      %v289 = vld [vmem:[%s1 + $0x30] sm:$0xf]
      %v290 = vld [vmem:[%s1 + $0x34] sm:$0xf]
      %v291 = vld [vmem:[%s1 + $0x38] sm:$0xf]
      %v292 = vld [vmem:[%s1 + $0x3c] sm:$0xf]
      %v293 = vld [vmem:[%s2] sm:$0x1]
      %v295 = vperm.slane %v293, 0
      %v313 = vunpack.c.l.b16 %v277
      %v314 = vunpack.c.l.b16 %v278
      %v315 = vunpack.c.l.b16 %v279
      %v316 = vunpack.c.l.b16 %v280
      %v317 = vunpack.c.l.b16 %v281
      %v318 = vunpack.c.l.b16 %v282
      %v319 = vunpack.c.l.b16 %v283
      %v320 = vunpack.c.l.b16 %v284
      %v321 = vunpack.c.l.b16 %v285
      %v322 = vunpack.c.l.b16 %v286
      %v323 = vunpack.c.l.b16 %v287
      %v324 = vunpack.c.l.b16 %v288
      %v325 = vunpack.c.l.b16 %v289
      %v326 = vunpack.c.l.b16 %v290
      %v327 = vunpack.c.l.b16 %v291
      %v328 = vunpack.c.l.b16 %v292
      %v329 = vpack.c.b16 %v314, %v313
      %v330 = vpack.c.b16 %v316, %v315
      %v331 = vpack.c.b16 %v318, %v317
      %v332 = vpack.c.b16 %v320, %v319
      %v333 = vpack.c.b16 %v322, %v321
      %v334 = vpack.c.b16 %v324, %v323
      %v335 = vpack.c.b16 %v326, %v325
      %v336 = vpack.c.b16 %v328, %v327
      %345 = vmatpush.bf16.msra.mxu0 %v336
      %346 = vmatpush.bf16.msra.mxu0 %v335
      %347 = vmatpush.bf16.msra.mxu0 %v334
      %348 = vmatpush.bf16.msra.mxu0 %v333
      %349 = vmatpush.bf16.msra.mxu0 %v332
      %350 = vmatpush.bf16.msra.mxu0 %v331
      %351 = vmatpush.bf16.msra.mxu0 %v330
      %352 = vmatpush.bf16.msra.mxu0 %v329
      %353 = vmatmul.bf16.gmra.mxu0 %v276
      %v354 = vpop.f32.mrf.mxu0
      %v355 = vadd.f32 %v295, %v354
      %v356 = vpop.f32.mrf.mxu0
      %357 = vdwg.mxu0
      %v358 = vmax.f32 %v355, 0.0
      %v359 = vpack.c.bf16 %v358, %v358
      %v360 = vld [vmem:[%s3] sm:$0xf]
      %v361 = vld [vmem:[%s3 + $0x4] sm:$0xf]
      %v362 = vld [vmem:[%s3 + $0x8] sm:$0xf]
      %v363 = vld [vmem:[%s3 + $0xc] sm:$0xf]
      %v364 = vld [vmem:[%s3 + $0x10] sm:$0xf]
      %v365 = vld [vmem:[%s3 + $0x14] sm:$0xf]
      %v366 = vld [vmem:[%s3 + $0x18] sm:$0xf]
      %v367 = vld [vmem:[%s3 + $0x1c] sm:$0xf]
      %v368 = vld [vmem:[%s4] sm:$0x1]
      %v370 = vperm.slane %v368, 0
      %v380 = vunpack.c.l.b16 %v360
      %v381 = vunpack.c.l.b16 %v361
      %v382 = vunpack.c.l.b16 %v362
      %v383 = vunpack.c.l.b16 %v363
      %v384 = vunpack.c.l.b16 %v364
      %v385 = vunpack.c.l.b16 %v365
      %v386 = vunpack.c.l.b16 %v366
      %v387 = vunpack.c.l.b16 %v367
      %v388 = vpack.c.b16 %v381, %v380
      %v389 = vpack.c.b16 %v383, %v382
      %v390 = vpack.c.b16 %v385, %v384
      %v391 = vpack.c.b16 %v387, %v386
      %vm396 = vcmask 523264
      %v398 = vsel %vm396, %v359, 0
      %400 = vmatpush.bf16.msra.mxu0 0
      %401 = vmatpush.bf16.msra.mxu0 0
      %402 = vmatpush.bf16.msra.mxu0 0
      %403 = vmatpush.bf16.msra.mxu0 0
      %404 = vmatpush.bf16.msra.mxu0 %v391
      %405 = vmatpush.bf16.msra.mxu0 %v390
      %406 = vmatpush.bf16.msra.mxu0 %v389
      %407 = vmatpush.bf16.msra.mxu0 %v388
      %408 = vmatmul.bf16.gmra.mxu0 %v398
      %v409 = vpop.f32.mrf.mxu0
      %v410 = vadd.f32 %v370, %v409
      %v411 = vpop.f32.mrf.mxu0
      %412 = vdwg.mxu0
      %v413 = vmax.f32 %v410, 0.0
      %v414 = vpack.c.bf16 %v413, %v413
      %v415 = vld [vmem:[%s5] sm:$0xf]
      %v416 = vld [vmem:[%s5 + $0x4] sm:$0xf]
      %v417 = vld [vmem:[%s6] sm:$0x1]
      %v419 = vperm.slane %v417, 0
      %v423 = vunpack.c.l.b16 %v415
      %v424 = vunpack.c.l.b16 %v416
      %v425 = vpack.c.b16 %v424, %v423
      %vm427 = vcmask 130048
      %v429 = vsel %vm427, %v414, 0
      %431 = vmatpush.bf16.msra.mxu0 0
      %432 = vmatpush.bf16.msra.mxu0 0
      %433 = vmatpush.bf16.msra.mxu0 0
      %434 = vmatpush.bf16.msra.mxu0 0
      %435 = vmatpush.bf16.msra.mxu0 0
      %436 = vmatpush.bf16.msra.mxu0 0
      %437 = vmatpush.bf16.msra.mxu0 0
      %438 = vmatpush.bf16.msra.mxu0 %v425
      %439 = vmatmul.bf16.gmra.mxu0 %v429
      %v440 = vpop.f32.mrf.mxu0
      %v441 = vadd.f32 %v419, %v440
      %v442 = vpop.f32.mrf.mxu0
      %443 = vdwg.mxu0
      %vm444 = vcmask 80896
      %445 = vst.msk [vmem:[%s273] sm:$0xff] %vm444, %v441
      %p446 = scmp.lt.s32.totalorder %s18, 2
      %s447 = scalar_select %p446, %s18, 2
      %s448 = smul.addr %s447, 8
      %s449 = scalar_lea.vmem %s7, %s448
      // Predicated region
      $region49: #{tpu_custom_call.1} parent=47 // pred_check
        %p450 = pneg %p188
      $region50: #{tpu_custom_call.1} parent=47 // pred_check_branch
        %452 = sbr.rel (%p450) target = $region52
      $region51: #{tpu_custom_call.1} parent=47 // pred_region
        _
      $region52: #{tpu_custom_call.1} parent=47 // pred_fallthru
        _
    $region48: #{tpu_custom_call.1} parent=5 // pred_fallthru
      _
    %p453 = scmp.le.s32.totalorder 2, %s13
    // Predicated region
    $region53: #{tpu_custom_call.1} parent=5 // pred_check
      %p454 = pneg %p453
    $region54: #{tpu_custom_call.1} parent=5 // pred_check_branch
      %456 = sbr.rel (%p454) target = $region56
    $region55: #{tpu_custom_call.1} parent=5 // pred_region
      %s457 = ssub.s32 %s13, 2
      // Predicated region
      $region57: #{tpu_custom_call.1} parent=55 // pred_check
        %p458 = pneg %p194
      $region58: #{tpu_custom_call.1} parent=55 // pred_check_branch
        %460 = sbr.rel (%p458) target = $region60
      $region59: #{tpu_custom_call.1} parent=55 // pred_region
        %p461 = scmp.lt.s32.totalorder %s19, 2
        %s462 = scalar_select %p461, %s19, 2
        %s463 = smul.addr %s462, 8
        %s464 = scalar_lea.vmem %s7, %s463
      $region60: #{tpu_custom_call.1} parent=55 // pred_fallthru
        _
    $region56: #{tpu_custom_call.1} parent=5 // pred_fallthru
      _
  $region6: #{tpu_custom_call.1} parent=0 // loop_footer
    %s17 = sadd.s32 1, %s13
  $region7: #{tpu_custom_call.1} parent=0 // loop_footer_branch
    %12 = sbr.rel target = $region3
  $region8: #{tpu_custom_call.1} parent=0 // loop_exit
    _

</llo_original>
